<compile_context>
chip_gen: v7x
topology: tpu7x:2x2x1
jax: 0.10.0
libtpu: 0.0.40
codegen_flags: <defaults>
</compile_context>

<pallas_src>
import functools

import jax
import jax.numpy as jnp
from jax.experimental import pallas as pl
from jax.experimental.pallas import tpu as pltpu


def _round_up(x, m):
    return ((x + m - 1) // m) * m


def _gelu(x):
    # tanh-approximation gelu, matching lean_transformer's ACT2FN['gelu_fused'].
    # TODO(synk): exact-erf gelu would differ by ~1e-3 relative.
    return 0.5 * x * (1.0 + jnp.tanh(0.7978845608028654 * (x + 0.044715 * x * x * x)))


def lean_ffn_kernel(*refs, ln_eps, gated, residual):
    if gated:
        (x_ref, ln_w_ref, ln_b_ref, w1g_ref, b1g_ref, w1l_ref, b1l_ref,
         w2_ref, b2_ref, o_ref, xln_ref, acc_ref) = refs
    else:
        (x_ref, ln_w_ref, ln_b_ref, w1_ref, b1_ref, w2_ref, b2_ref,
         o_ref, xln_ref, acc_ref) = refs

    k = pl.program_id(1)
    nk = pl.num_programs(1)

    # ---- first intermediate chunk: layer-norm the row tile once, zero acc ----
    @pl.when(k == 0)
    def _():
        x = x_ref[...].astype(jnp.float32)
        mean = jnp.mean(x, axis=-1, keepdims=True)
        xc = x - mean
        var = jnp.mean(xc * xc, axis=-1, keepdims=True)
        # fold inv_std and the LN gain into a single scale vector (one VPU pass)
        scale = jax.lax.rsqrt(var + ln_eps) * ln_w_ref[...].astype(jnp.float32)
        x_ln = xc * scale + ln_b_ref[...].astype(jnp.float32)
        xln_ref[...] = x_ln.astype(xln_ref.dtype)
        acc_ref[...] = jnp.zeros_like(acc_ref)

    # ---- i2h projection for this intermediate chunk (native weight dtype) ----
    x_mm = xln_ref[...]
    if gated:
        gate = jnp.dot(x_mm, w1g_ref[...], preferred_element_type=jnp.float32)
        gate = gate + b1g_ref[...].astype(jnp.float32)
        lin = jnp.dot(x_mm, w1l_ref[...], preferred_element_type=jnp.float32)
        lin = lin + b1l_ref[...].astype(jnp.float32)
        hid = _gelu(gate) * lin                              # (tm, tI)
    else:
        pre = jnp.dot(x_mm, w1_ref[...], preferred_element_type=jnp.float32)
        pre = pre + b1_ref[...].astype(jnp.float32)
        hid = _gelu(pre)                                     # (tm, tI)

    # ---- h2o partial product into the f32 accumulator ----
    acc_ref[...] += jnp.dot(hid.astype(w2_ref.dtype), w2_ref[...],
                            preferred_element_type=jnp.float32)

    # ---- last chunk: bias, residual (re-read x from its VMEM buffer), store --
    @pl.when(k == nk - 1)
    def _():
        out = acc_ref[...] + b2_ref[...].astype(jnp.float32)
        if residual:
            out = out + x_ref[...].astype(jnp.float32)
        o_ref[...] = out.astype(o_ref.dtype)


def _default_vmem_limit_bytes():
    try:
        cap = int(pltpu.get_tpu_info().vmem_capacity_bytes)
        if cap > 0:
            return (cap * 3) // 4        # leave headroom for Mosaic scratch
    except Exception:
        pass
    return 48 * 1024 * 1024              # conservative: fits v5e/v6e/v7x


def _pick_ti(i_in, target):
    """Largest divisor of i_in that is a multiple of 128 and <= target (else i_in)."""
    if i_in <= target or i_in % 128 != 0:
        return i_in
    t = max(128, (target // 128) * 128)
    while t >= 128:
        if i_in % t == 0:
            return t
        t -= 128
    return i_in


def _estimate_vmem_bytes(tm, ti, H, x_bytes, w_bytes, gated):
    nw1 = 2 if gated else 1
    io_bufs = 2 * 2 * tm * H * x_bytes               # x + out, double-buffered
    scratch = tm * H * (w_bytes + 4)                 # x_ln scratch + f32 accumulator
    weights = 2 * (nw1 + 1) * H * ti * w_bytes       # streamed W1(/gate,lin) + W2 tiles
    temps = (3 if gated else 2) * tm * ti * 4        # live f32 pre/gate/lin/hid
    return io_bufs + scratch + weights + temps


def lean_ffn(x, ln_w, ln_b, w1, b1, w2, b2, *,
             ln_eps=1e-12, gated=False, residual=True,
             tm=256, max_ti=512, vmem_limit_bytes=None):
    """x: [..., hidden]; w1: [hidden, i2h_out]; w2: [intermediate, hidden].

    Weights may be bf16 (recommended at real sizes); LN stats and the h2o
    accumulation stay f32. W1/W2 are streamed over an inner intermediate-dim
    grid axis, so they never need to be fully VMEM-resident.
    """
    orig_shape = x.shape
    H = orig_shape[-1]
    x2d = x.reshape(-1, H)
    N = x2d.shape[0]
    I_out = w1.shape[1]
    I_in = w2.shape[0]
    if gated:
        assert I_out == 2 * I_in, "gated i2h must produce 2*intermediate features"
    else:
        assert I_out == I_in

    mm_dtype = w1.dtype
    x_bytes = jnp.dtype(x.dtype).itemsize
    w_bytes = jnp.dtype(mm_dtype).itemsize
    if vmem_limit_bytes is None:
        vmem_limit_bytes = _default_vmem_limit_bytes()
    budget = int(vmem_limit_bytes * 0.6)

    # ---- tile selection: shrink tI, then tm, until the footprint fits -------
    sub = max(8, 32 // x_bytes)                       # f32: 8 rows, bf16: 16 rows
    tm_req = max(sub, _round_up(tm, sub))
    ti = _pick_ti(I_in, max_ti)
    while (_estimate_vmem_bytes(tm_req, ti, H, x_bytes, w_bytes, gated) > budget
           and ti > 128 and I_in % 128 == 0):
        new_ti = _pick_ti(I_in, max(128, ti - 128))
        if new_ti >= ti:
            break
        ti = new_ti
    while (_estimate_vmem_bytes(tm_req, ti, H, x_bytes, w_bytes, gated) > budget
           and tm_req > sub):
        tm_req = max(sub, _round_up(tm_req // 2, sub))
    n_ti = I_in // ti

    # ---- balanced row tiles: cap padding waste at one sublane group ---------
    n_tiles = max(1, -(-N // tm_req))
    tm_eff = min(_round_up(-(-N // n_tiles), sub), _round_up(N, sub))
    n_tiles = -(-N // tm_eff)
    n_pad = n_tiles * tm_eff
    if n_pad != N:
        x2d = jnp.pad(x2d, ((0, n_pad - N), (0, 0)))

    # ---- cost estimate (includes per-row-tile weight re-streaming) ----------
    nw1 = 2 if gated else 1
    flops = 2 * n_pad * H * I_out + 2 * n_pad * I_in * H
    transcendentals = n_pad * (I_in + 1)              # gelu tanh per hid elem + rsqrt/row
    weight_bytes = (nw1 * H * I_in + I_in * H) * w_bytes
    bytes_accessed = int(2 * n_pad * H * x_bytes            # x in + out
                         + n_tiles * weight_bytes           # streamed weights per row tile
                         + (I_out + 3 * H) * 4)             # biases + LN params

    # ---- specs ---------------------------------------------------------------
    in_specs = [
        pl.BlockSpec((tm_eff, H), lambda i, k: (i, 0)),      # x rows (resident across k)
        pl.BlockSpec((1, H), lambda i, k: (0, 0)),           # ln weight
        pl.BlockSpec((1, H), lambda i, k: (0, 0)),           # ln bias
    ]
    args = [x2d, ln_w.reshape(1, H), ln_b.reshape(1, H)]
    if gated:
        in_specs += [pl.BlockSpec((H, ti), lambda i, k: (0, k)),
                     pl.BlockSpec((1, ti), lambda i, k: (0, k)),
                     pl.BlockSpec((H, ti), lambda i, k: (0, k)),
                     pl.BlockSpec((1, ti), lambda i, k: (0, k))]
        args += [w1[:, :I_in], b1[:I_in].reshape(1, I_in),
                 w1[:, I_in:], b1[I_in:].reshape(1, I_in)]
    else:
        in_specs += [pl.BlockSpec((H, ti), lambda i, k: (0, k)),
                     pl.BlockSpec((1, ti), lambda i, k: (0, k))]
        args += [w1, b1.reshape(1, I_out)]
    in_specs += [pl.BlockSpec((ti, H), lambda i, k: (k, 0)),
                 pl.BlockSpec((1, H), lambda i, k: (0, 0))]
    args += [w2, b2.reshape(1, H)]

    out2d = pl.pallas_call(
        functools.partial(lean_ffn_kernel, ln_eps=ln_eps, gated=gated,
                          residual=residual),
        out_shape=jax.ShapeDtypeStruct((n_pad, H), x.dtype),
        grid_spec=pltpu.PrefetchScalarGridSpec(
            num_scalar_prefetch=0,
            grid=(n_tiles, n_ti),                    # rows parallel, I reduction last
            in_specs=in_specs,
            out_specs=pl.BlockSpec((tm_eff, H), lambda i, k: (i, 0)),
            scratch_shapes=[pltpu.VMEM((tm_eff, H), mm_dtype),      # x_ln
                            pltpu.VMEM((tm_eff, H), jnp.float32)],  # accumulator
        ),
        compiler_params=pltpu.CompilerParams(
            dimension_semantics=("parallel", "arbitrary"),
            vmem_limit_bytes=int(vmem_limit_bytes)),
        cost_estimate=pl.CostEstimate(
            flops=flops, transcendentals=transcendentals,
            bytes_accessed=bytes_accessed),
    )(*args)

    return out2d[:N].reshape(orig_shape)


def lean_ffn_reference(x, ln_w, ln_b, w1, b1, w2, b2, *,
                       ln_eps=1e-12, gated=False, residual=True):
    orig_shape = x.shape
    H = orig_shape[-1]
    x2d = x.reshape(-1, H).astype(jnp.float32)
    mean = jnp.mean(x2d, axis=-1, keepdims=True)
    var = jnp.mean((x2d - mean) ** 2, axis=-1, keepdims=True)
    x_ln = (x2d - mean) * jax.lax.rsqrt(var + ln_eps) * ln_w + ln_b
    hi = jax.lax.Precision.HIGHEST
    pre = jnp.dot(x_ln, w1.astype(jnp.float32), precision=hi) + b1
    if gated:
        inter = pre.shape[-1] // 2
        hid = _gelu(pre[:, :inter]) * pre[:, inter:]
    else:
        hid = _gelu(pre)
    out = jnp.dot(hid, w2.astype(jnp.float32), precision=hi) + b2
    if residual:
        out = out + x2d
    return out.reshape(orig_shape)


if __name__ == "__main__":
    base_key = jax.random.PRNGKey(0)

    def make_case(seed, batch, seq, hidden, intermediate, gated):
        ks = jax.random.split(jax.random.fold_in(base_key, seed), 7)
        x = jax.random.normal(ks[0], (batch, seq, hidden), jnp.float32)
        ln_w = jnp.ones((hidden,), jnp.float32) + 0.01 * jax.random.normal(ks[1], (hidden,))
        ln_b = 0.01 * jax.random.normal(ks[2], (hidden,))
        i2h_out = 2 * intermediate if gated else intermediate
        # nn.Linear weight is (out, in); the kernel takes the transposed [in, out].
        w1 = jax.random.normal(ks[3], (hidden, i2h_out), jnp.float32) / jnp.sqrt(hidden)
        b1 = 0.01 * jax.random.normal(ks[4], (i2h_out,))
        w2 = (jax.random.normal(ks[5], (intermediate, hidden), jnp.float32)
              / jnp.sqrt(intermediate))
        b2 = 0.01 * jax.random.normal(ks[6], (hidden,))
        return x, ln_w, ln_b, w1, b1, w2, b2

    # --- non-gated, f32, single tile (grid (1,1)) ---
    x, ln_w, ln_b, w1, b1, w2, b2 = make_case(0, 2, 8, 32, 64, gated=False)
    out = jax.block_until_ready(lean_ffn(x, ln_w, ln_b, w1, b1, w2, b2))
    ref = lean_ffn_reference(x, ln_w, ln_b, w1, b1, w2, b2)
    assert out.shape == x.shape
    assert jnp.allclose(out, ref, atol=1e-4, rtol=1e-4), "f32 non-gated mismatch"

    # --- gated, f32 ---
    xg, ln_wg, ln_bg, w1g, b1g, w2g, b2g = make_case(1, 2, 8, 32, 64, gated=True)
    outg = jax.block_until_ready(
        lean_ffn(xg, ln_wg, ln_bg, w1g, b1g, w2g, b2g, gated=True))
    refg = lean_ffn_reference(xg, ln_wg, ln_bg, w1g, b1g, w2g, b2g, gated=True)
    assert jnp.allclose(outg, refg, atol=1e-4, rtol=1e-4), "f32 gated mismatch"

    # --- non-gated, bf16 activations/weights (native-dtype MXU path) ---
    xb = x.astype(jnp.bfloat16)
    w1b, w2b = w1.astype(jnp.bfloat16), w2.astype(jnp.bfloat16)
    outb = jax.block_until_ready(lean_ffn(xb, ln_w, ln_b, w1b, b1, w2b, b2))
    refb = lean_ffn_reference(xb.astype(jnp.float32), ln_w, ln_b,
                              w1b.astype(jnp.float32), b1,
                              w2b.astype(jnp.float32), b2)
    assert outb.dtype == jnp.bfloat16
    assert jnp.allclose(outb.astype(jnp.float32), refb, atol=5e-2, rtol=5e-2), \
        "bf16 non-gated mismatch"

    # --- ragged token count (exercises row padding) ---
    xr = x[:1, :5]
    outr = jax.block_until_ready(lean_ffn(xr, ln_w, ln_b, w1, b1, w2, b2))
    refr = lean_ffn_reference(xr, ln_w, ln_b, w1, b1, w2, b2)
    assert jnp.allclose(outr, refr, atol=1e-4, rtol=1e-4), "padded-N mismatch"

    # --- multi-tile grid: 2 row tiles x 2 intermediate chunks (accumulator path) ---
    x2, ln_w2, ln_b2, w1_2, b1_2, w2_2, b2_2 = make_case(2, 2, 8, 128, 256, gated=False)
    out2 = jax.block_until_ready(
        lean_ffn(x2, ln_w2, ln_b2, w1_2, b1_2, w2_2, b2_2, tm=8, max_ti=128))
    ref2 = lean_ffn_reference(x2, ln_w2, ln_b2, w1_2, b1_2, w2_2, b2_2)
    assert jnp.allclose(out2, ref2, atol=2e-4, rtol=2e-4), "I-tiled non-gated mismatch"

    # --- multi-tile gated ---
    x3, ln_w3, ln_b3, w1_3, b1_3, w2_3, b2_3 = make_case(3, 2, 8, 128, 256, gated=True)
    out3 = jax.block_until_ready(
        lean_ffn(x3, ln_w3, ln_b3, w1_3, b1_3, w2_3, b2_3, gated=True, tm=8, max_ti=128))
    ref3 = lean_ffn_reference(x3, ln_w3, ln_b3, w1_3, b1_3, w2_3, b2_3, gated=True)
    assert jnp.allclose(out3, ref3, atol=2e-4, rtol=2e-4), "I-tiled gated mismatch"

    print("KERNEL_OK")
</pallas_src>

<mosaic_0001>
module attributes {stable_mosaic.version = 11 : i64} {
  func.func @lean_ffn_kernel(%arg0: i32, %arg1: i32, %arg2: memref<16x32xf32, #tpu.memory_space<vmem>>, %arg3: memref<1x32xf32, #tpu.memory_space<vmem>>, %arg4: memref<1x32xf32, #tpu.memory_space<vmem>>, %arg5: memref<32x64xf32, #tpu.memory_space<vmem>>, %arg6: memref<1x64xf32, #tpu.memory_space<vmem>>, %arg7: memref<64x32xf32, #tpu.memory_space<vmem>>, %arg8: memref<1x32xf32, #tpu.memory_space<vmem>>, %arg9: memref<16x32xf32, #tpu.memory_space<vmem>>, %arg10: memref<16x32xf32, #tpu.memory_space<vmem>>, %arg11: memref<16x32xf32, #tpu.memory_space<vmem>>) attributes {dimension_semantics = [#tpu.dimension_semantics<parallel>, #tpu.dimension_semantics<arbitrary>], iteration_bounds = array<i64: 1, 1>, scalar_prefetch = 0 : i64, scratch_operands = 2 : i64, tpu.core_type = #tpu.core_type<tc>, window_params = [{transform_indices = @transform_0, window_bounds = array<i64: 16, 32>}, {pipeline_mode = #tpu.pipeline_mode<synchronous>, transform_indices = @transform_1, window_bounds = array<i64: 1, 32>}, {pipeline_mode = #tpu.pipeline_mode<synchronous>, transform_indices = @transform_2, window_bounds = array<i64: 1, 32>}, {transform_indices = @transform_3, window_bounds = array<i64: 32, 64>}, {transform_indices = @transform_4, window_bounds = array<i64: 1, 64>}, {transform_indices = @transform_5, window_bounds = array<i64: 64, 32>}, {pipeline_mode = #tpu.pipeline_mode<synchronous>, transform_indices = @transform_6, window_bounds = array<i64: 1, 32>}, {transform_indices = @transform_7, window_bounds = array<i64: 16, 32>}]} {
    %c0_i32 = arith.constant 0 : i32
    %0 = arith.cmpi eq, %arg1, %c0_i32 : i32
    %1 = arith.extui %0 : i1 to i32
    %c0_i32_0 = arith.constant 0 : i32
    %2 = arith.cmpi ne, %1, %c0_i32_0 : i32
    scf.if %2 {
      %c0_19 = arith.constant 0 : index
      %c0_20 = arith.constant 0 : index
      %30 = vector.load %arg2[%c0_19, %c0_20] : memref<16x32xf32, #tpu.memory_space<vmem>>, vector<16x32xf32>
      %cst_21 = arith.constant dense<0.000000e+00> : vector<16xf32>
      %31 = vector.multi_reduction <add>, %30, %cst_21 [1] : vector<16x32xf32> to vector<16xf32>
      %32 = vector.shape_cast %31 : vector<16xf32> to vector<16x1xf32>
      %cst_22 = arith.constant 3.200000e+01 : f32
      %33 = vector.broadcast %cst_22 : f32 to vector<16x1xf32>
      %34 = arith.divf %32, %33 : vector<16x1xf32>
      %35 = vector.broadcast %34 : vector<16x1xf32> to vector<16x32xf32>
      %36 = arith.subf %30, %35 : vector<16x32xf32>
      %37 = arith.mulf %36, %36 : vector<16x32xf32>
      %cst_23 = arith.constant dense<0.000000e+00> : vector<16xf32>
      %38 = vector.multi_reduction <add>, %37, %cst_23 [1] : vector<16x32xf32> to vector<16xf32>
      %39 = vector.shape_cast %38 : vector<16xf32> to vector<16x1xf32>
      %cst_24 = arith.constant 3.200000e+01 : f32
      %40 = vector.broadcast %cst_24 : f32 to vector<16x1xf32>
      %41 = arith.divf %39, %40 : vector<16x1xf32>
      %cst_25 = arith.constant 9.99999996E-13 : f32
      %42 = vector.broadcast %cst_25 : f32 to vector<16x1xf32>
      %43 = arith.addf %41, %42 : vector<16x1xf32>
      %44 = math.rsqrt %43 : vector<16x1xf32>
      %c0_26 = arith.constant 0 : index
      %c0_27 = arith.constant 0 : index
      %45 = vector.load %arg3[%c0_26, %c0_27] : memref<1x32xf32, #tpu.memory_space<vmem>>, vector<1x32xf32>
      %46 = vector.broadcast %44 : vector<16x1xf32> to vector<16x32xf32>
      %47 = vector.broadcast %45 : vector<1x32xf32> to vector<16x32xf32>
      %48 = arith.mulf %46, %47 : vector<16x32xf32>
      %49 = arith.mulf %36, %48 : vector<16x32xf32>
      %c0_28 = arith.constant 0 : index
      %c0_29 = arith.constant 0 : index
      %50 = vector.load %arg4[%c0_28, %c0_29] : memref<1x32xf32, #tpu.memory_space<vmem>>, vector<1x32xf32>
      %51 = vector.broadcast %50 : vector<1x32xf32> to vector<16x32xf32>
      %52 = arith.addf %49, %51 : vector<16x32xf32>
      %c0_30 = arith.constant 0 : index
      %c0_31 = arith.constant 0 : index
      %53 = vector.load %arg10[%c0_30, %c0_31] : memref<16x32xf32, #tpu.memory_space<vmem>>, vector<16x32xf32>
      tpu.vector_store %arg10[%c0_30, %c0_31], %52 {strides = array<i32>} : memref<16x32xf32, #tpu.memory_space<vmem>>, vector<16x32xf32>,
      %cst_32 = arith.constant 0.000000e+00 : f32
      %54 = vector.broadcast %cst_32 : f32 to vector<16x32xf32>
      %c0_33 = arith.constant 0 : index
      %c0_34 = arith.constant 0 : index
      %55 = vector.load %arg11[%c0_33, %c0_34] : memref<16x32xf32, #tpu.memory_space<vmem>>, vector<16x32xf32>
      tpu.vector_store %arg11[%c0_33, %c0_34], %54 {strides = array<i32>} : memref<16x32xf32, #tpu.memory_space<vmem>>, vector<16x32xf32>,
    } else {
    }
    %c0 = arith.constant 0 : index
    %c0_1 = arith.constant 0 : index
    %3 = vector.load %arg10[%c0, %c0_1] : memref<16x32xf32, #tpu.memory_space<vmem>>, vector<16x32xf32>
    %c0_2 = arith.constant 0 : index
    %c0_3 = arith.constant 0 : index
    %4 = vector.load %arg5[%c0_2, %c0_3] : memref<32x64xf32, #tpu.memory_space<vmem>>, vector<32x64xf32>
    %cst = arith.constant dense<0.000000e+00> : vector<16x64xf32>
    %5 = tpu.matmul %3, %4, %cst {dimension_numbers = #tpu.dot_dimension_numbers<[1], [0], [0], [1], [0, 0, 1, 1], [], []>} : vector<16x32xf32>, vector<32x64xf32>, vector<16x64xf32> -> vector<16x64xf32>
    %c0_4 = arith.constant 0 : index
    %c0_5 = arith.constant 0 : index
    %6 = vector.load %arg6[%c0_4, %c0_5] : memref<1x64xf32, #tpu.memory_space<vmem>>, vector<1x64xf32>
    %7 = vector.broadcast %6 : vector<1x64xf32> to vector<16x64xf32>
    %8 = arith.addf %5, %7 : vector<16x64xf32>
    %cst_6 = arith.constant 5.000000e-01 : f32
    %9 = vector.broadcast %cst_6 : f32 to vector<16x64xf32>
    %10 = arith.mulf %9, %8 : vector<16x64xf32>
    %cst_7 = arith.constant 4.471500e-02 : f32
    %11 = vector.broadcast %cst_7 : f32 to vector<16x64xf32>
    %12 = arith.mulf %11, %8 : vector<16x64xf32>
    %13 = arith.mulf %12, %8 : vector<16x64xf32>
    %14 = arith.mulf %13, %8 : vector<16x64xf32>
    %15 = arith.addf %8, %14 : vector<16x64xf32>
    %cst_8 = arith.constant 0.797884583 : f32
    %16 = vector.broadcast %cst_8 : f32 to vector<16x64xf32>
    %17 = arith.mulf %16, %15 : vector<16x64xf32>
    %18 = math.tanh %17 : vector<16x64xf32>
    %cst_9 = arith.constant 1.000000e+00 : f32
    %19 = vector.broadcast %cst_9 : f32 to vector<16x64xf32>
    %20 = arith.addf %19, %18 : vector<16x64xf32>
    %21 = arith.mulf %10, %20 : vector<16x64xf32>
    %c0_10 = arith.constant 0 : index
    %c0_11 = arith.constant 0 : index
    %22 = vector.load %arg11[%c0_10, %c0_11] : memref<16x32xf32, #tpu.memory_space<vmem>>, vector<16x32xf32>
    %c0_12 = arith.constant 0 : index
    %c0_13 = arith.constant 0 : index
    %23 = vector.load %arg7[%c0_12, %c0_13] : memref<64x32xf32, #tpu.memory_space<vmem>>, vector<64x32xf32>
    %cst_14 = arith.constant dense<0.000000e+00> : vector<16x32xf32>
    %24 = tpu.matmul %21, %23, %cst_14 {dimension_numbers = #tpu.dot_dimension_numbers<[1], [0], [0], [1], [0, 0, 1, 1], [], []>} : vector<16x64xf32>, vector<64x32xf32>, vector<16x32xf32> -> vector<16x32xf32>
    %25 = arith.addf %22, %24 : vector<16x32xf32>
    %c0_15 = arith.constant 0 : index
    %c0_16 = arith.constant 0 : index
    %26 = vector.load %arg11[%c0_15, %c0_16] : memref<16x32xf32, #tpu.memory_space<vmem>>, vector<16x32xf32>
    tpu.vector_store %arg11[%c0_15, %c0_16], %25 {strides = array<i32>} : memref<16x32xf32, #tpu.memory_space<vmem>>, vector<16x32xf32>,
    %c0_i32_17 = arith.constant 0 : i32
    %27 = arith.cmpi eq, %arg1, %c0_i32_17 : i32
    %28 = arith.extui %27 : i1 to i32
    %c0_i32_18 = arith.constant 0 : i32
    %29 = arith.cmpi ne, %28, %c0_i32_18 : i32
    scf.if %29 {
      %c0_19 = arith.constant 0 : index
      %c0_20 = arith.constant 0 : index
      %30 = vector.load %arg11[%c0_19, %c0_20] : memref<16x32xf32, #tpu.memory_space<vmem>>, vector<16x32xf32>
      %c0_21 = arith.constant 0 : index
      %c0_22 = arith.constant 0 : index
      %31 = vector.load %arg8[%c0_21, %c0_22] : memref<1x32xf32, #tpu.memory_space<vmem>>, vector<1x32xf32>
      %32 = vector.broadcast %31 : vector<1x32xf32> to vector<16x32xf32>
      %33 = arith.addf %30, %32 : vector<16x32xf32>
      %c0_23 = arith.constant 0 : index
      %c0_24 = arith.constant 0 : index
      %34 = vector.load %arg2[%c0_23, %c0_24] : memref<16x32xf32, #tpu.memory_space<vmem>>, vector<16x32xf32>
      %35 = arith.addf %33, %34 : vector<16x32xf32>
      %c0_25 = arith.constant 0 : index
      %c0_26 = arith.constant 0 : index
      %36 = vector.load %arg9[%c0_25, %c0_26] : memref<16x32xf32, #tpu.memory_space<vmem>>, vector<16x32xf32>
      tpu.vector_store %arg9[%c0_25, %c0_26], %35 {strides = array<i32>} : memref<16x32xf32, #tpu.memory_space<vmem>>, vector<16x32xf32>,
    } else {
    }
    return
  }
  func.func @transform_0(%arg0: i32, %arg1: i32) -> (i32, i32) {
    %c0_i32 = arith.constant 0 : i32
    %c0_i32_0 = arith.constant 0 : i32
    return %arg0, %c0_i32 : i32, i32
  }
  func.func @transform_1(%arg0: i32, %arg1: i32) -> (i32, i32) {
    %c0_i32 = arith.constant 0 : i32
    %c0_i32_0 = arith.constant 0 : i32
    %c0_i32_1 = arith.constant 0 : i32
    return %c0_i32, %c0_i32_0 : i32, i32
  }
  func.func @transform_2(%arg0: i32, %arg1: i32) -> (i32, i32) {
    %c0_i32 = arith.constant 0 : i32
    %c0_i32_0 = arith.constant 0 : i32
    %c0_i32_1 = arith.constant 0 : i32
    return %c0_i32, %c0_i32_0 : i32, i32
  }
  func.func @transform_3(%arg0: i32, %arg1: i32) -> (i32, i32) {
    %c0_i32 = arith.constant 0 : i32
    %c0_i32_0 = arith.constant 0 : i32
    return %c0_i32, %arg1 : i32, i32
  }
  func.func @transform_4(%arg0: i32, %arg1: i32) -> (i32, i32) {
    %c0_i32 = arith.constant 0 : i32
    %c0_i32_0 = arith.constant 0 : i32
    return %c0_i32, %arg1 : i32, i32
  }
  func.func @transform_5(%arg0: i32, %arg1: i32) -> (i32, i32) {
    %c0_i32 = arith.constant 0 : i32
    %c0_i32_0 = arith.constant 0 : i32
    return %arg1, %c0_i32 : i32, i32
  }
  func.func @transform_6(%arg0: i32, %arg1: i32) -> (i32, i32) {
    %c0_i32 = arith.constant 0 : i32
    %c0_i32_0 = arith.constant 0 : i32
    %c0_i32_1 = arith.constant 0 : i32
    return %c0_i32, %c0_i32_0 : i32, i32
  }
  func.func @transform_7(%arg0: i32, %arg1: i32) -> (i32, i32) {
    %c0_i32 = arith.constant 0 : i32
    %c0_i32_0 = arith.constant 0 : i32
    return %arg0, %c0_i32 : i32, i32
  }
}

</mosaic_0001>

<llo_original>
// kernel: tpu_custom_call.1
$region0: #{tpu_custom_call.1}
  #allocation0 [shape = 'u32[]', space=smem, size = 0x4, offset = 0x4, fixed_abs, tag = 'smem constant byte address 0x4 - core index']
  #allocation1 [shape = 'u32[144,128]{1,0:T(1,128)}', space=vmem, size = 0x12000, scoped, tag = 'internal scratch']
  #allocation2 [shape = 'f32[16,32]{1,0:T(8,128)}', space=vmem, size = 0x2000, scoped, tag = 'scratch operand']
  #allocation3 [shape = 'f32[16,32]{1,0:T(8,128)}', space=vmem, size = 0x2000, scoped, tag = 'scratch operand']
  %s0 = inlined_call_operand.vmem [shape: f32[16,32], index: 0, kind: input, shape index: {}]
  %s1 = inlined_call_operand.vmem [shape: f32[1,32], index: 1, kind: input, shape index: {}]
  %s2 = inlined_call_operand.vmem [shape: f32[1,32], index: 2, kind: input, shape index: {}]
  %s3 = inlined_call_operand.vmem [shape: f32[32,64], index: 3, kind: input, shape index: {}]
  %s4 = inlined_call_operand.vmem [shape: f32[1,64], index: 4, kind: input, shape index: {}]
  %s5 = inlined_call_operand.vmem [shape: f32[64,32], index: 5, kind: input, shape index: {}]
  %s6 = inlined_call_operand.vmem [shape: f32[1,32], index: 6, kind: input, shape index: {}]
  %s7 = inlined_call_operand.hbm [shape: f32[16,32], index: 7, kind: output, shape index: {}]
  %s8 = sld [smem:[#allocation0]]
  $region46: #{tpu_custom_call.1} parent=0
    _
  %s10 = ssub.s32 1, %s8
  %s11 = scalar_select 0, %s10, %s8
  $region1: #{tpu_custom_call.1} parent=0
    #allocation4 [shape = 'u8[8192]{0}', space=vmem, size = 0x2000, scoped, tag = 'output window, operand 0, single buffered']
    #allocation5 [shape = 's32[1]{0}', space=sflag, size = 0x4, scoped, tag = 'scoped memory for tpu_custom_call.1']
    %12 = vsyncpa [#allocation5], 0
    // Predicated region
    $region2: #{tpu_custom_call.1} parent=1 // pred_check
      _
    $region3: #{tpu_custom_call.1} parent=1 // pred_check_branch
      %14 = sbr.rel (0) target = $region5
    $region4: #{tpu_custom_call.1} parent=1 // pred_region
      _
    $region5: #{tpu_custom_call.1} parent=1 // pred_fallthru
      _
    // Predicated region
    $region6: #{tpu_custom_call.1} parent=1 // pred_check
      _
    $region7: #{tpu_custom_call.1} parent=1 // pred_check_branch
      %16 = sbr.rel (0) target = $region9
    $region8: #{tpu_custom_call.1} parent=1 // pred_region
      _
    $region9: #{tpu_custom_call.1} parent=1 // pred_fallthru
      _
    // Predicated region
    $region10: #{tpu_custom_call.1} parent=1 // pred_check
      _
    $region11: #{tpu_custom_call.1} parent=1 // pred_check_branch
      %18 = sbr.rel (0) target = $region13
    $region12: #{tpu_custom_call.1} parent=1 // pred_region
      _
    $region13: #{tpu_custom_call.1} parent=1 // pred_fallthru
      _
    // Predicated region
    $region14: #{tpu_custom_call.1} parent=1 // pred_check
      _
    $region15: #{tpu_custom_call.1} parent=1 // pred_check_branch
      %20 = sbr.rel (0) target = $region17
    $region16: #{tpu_custom_call.1} parent=1 // pred_region
      _
    $region17: #{tpu_custom_call.1} parent=1 // pred_fallthru
      _
    // Predicated region
    $region18: #{tpu_custom_call.1} parent=1 // pred_check
      _
    $region19: #{tpu_custom_call.1} parent=1 // pred_check_branch
      %22 = sbr.rel (0) target = $region21
    $region20: #{tpu_custom_call.1} parent=1 // pred_region
      _
    $region21: #{tpu_custom_call.1} parent=1 // pred_fallthru
      _
    // Predicated region
    $region22: #{tpu_custom_call.1} parent=1 // pred_check
      _
    $region23: #{tpu_custom_call.1} parent=1 // pred_check_branch
      %24 = sbr.rel (0) target = $region25
    $region24: #{tpu_custom_call.1} parent=1 // pred_region
      _
    $region25: #{tpu_custom_call.1} parent=1 // pred_fallthru
      _
    // Predicated region
    $region26: #{tpu_custom_call.1} parent=1 // pred_check
      _
    $region27: #{tpu_custom_call.1} parent=1 // pred_check_branch
      %26 = sbr.rel (0) target = $region29
    $region28: #{tpu_custom_call.1} parent=1 // pred_region
      _
    $region29: #{tpu_custom_call.1} parent=1 // pred_fallthru
      _
    %p27 = scmp.eq.s32.totalorder 0, 0
    // Predicated region
    $region30: #{tpu_custom_call.1} parent=1 // pred_check
      %p28 = pneg %p27
    $region31: #{tpu_custom_call.1} parent=1 // pred_check_branch
      %30 = sbr.rel (%p28) target = $region33
    $region32: #{tpu_custom_call.1} parent=1 // pred_region
      %v31 = vld [vmem:[%s0] sm:$0xff]
      %v32 = vld [vmem:[%s0 + $0x8] sm:$0xff]
      %vm33 = vcmask 261120
      %v34 = vsel %vm33, %v31, 0.0
      %35 = vadd.xlane.f32.xlu0 %v34
      %v36 = vpop.xlane.xlu0 %35
      %v37 = vsel %vm33, %v32, 0.0
      %38 = vadd.xlane.f32.xlu0 %v37
      %v39 = vpop.xlane.xlu0 %38
      %v40 = vrcp.pop 32.0
      %v41 = vmul.f32 %v36, %v40
      %v42 = vmul.f32 %v39, %v40
      %v43 = vsub.f32 %v31, %v41
      %v44 = vsub.f32 %v32, %v42
      %v45 = vmul.f32 %v43, %v43
      %v46 = vmul.f32 %v44, %v44
      %v47 = vsel %vm33, %v45, 0.0
      %48 = vadd.xlane.f32.xlu0 %v47
      %v49 = vpop.xlane.xlu0 %48
      %v50 = vsel %vm33, %v46, 0.0
      %51 = vadd.xlane.f32.xlu0 %v50
      %v52 = vpop.xlane.xlu0 %51
      %v53 = vmul.f32 %v49, %v40
      %v54 = vmul.f32 %v52, %v40
      %v55 = vadd.f32 %v53, 1e-12
      %v56 = vadd.f32 %v54, 1e-12
      %v57 = vrsqrt.pop %v55
      %v58 = vrsqrt.pop %v56
      %v59 = vld [vmem:[%s1] sm:$0x1]
      %v61 = vlaneseq
      %v62 = vshrl.u32 %v61, 7
      %v63 = vsub.s32 0, %v62
      %v64 = vrot.slane %v59, %v63
      %v66 = vmul.f32 %v57, %v64
      %v67 = vmul.f32 %v58, %v64
      %v68 = vmul.f32 %v43, %v66
      %v69 = vmul.f32 %v44, %v67
      %v70 = vld [vmem:[%s2] sm:$0x1]
      %v72 = vlaneseq
      %v73 = vshrl.u32 %v72, 7
      %v74 = vsub.s32 0, %v73
      %v75 = vrot.slane %v70, %v74
      %v77 = vadd.f32 %v68, %v75
      %v78 = vadd.f32 %v69, %v75
      %79 = vst.msk [vmem:[#allocation2] sm:$0xff] %vm33, %v77
      %80 = vst.msk [vmem:[#allocation2 + $0x8] sm:$0xff] %vm33, %v78
      %81 = vst.msk [vmem:[#allocation3] sm:$0xff] %vm33, 0.0
      %82 = vst.msk [vmem:[#allocation3 + $0x8] sm:$0xff] %vm33, 0.0
    $region33: #{tpu_custom_call.1} parent=1 // pred_fallthru
      _
    %v83 = vld [vmem:[#allocation2] sm:$0xff]
    %v84 = vld [vmem:[#allocation2 + $0x8] sm:$0xff]
    %v85 = vld [vmem:[%s3] sm:$0xff]
    %v86 = vld [vmem:[%s3 + $0x8] sm:$0xff]
    %v87 = vld [vmem:[%s3 + $0x10] sm:$0xff]
    %v88 = vld [vmem:[%s3 + $0x18] sm:$0xff]
    %v89 = vld [vmem:[%s4] sm:$0x1]
    %v91 = vlaneseq
    %v92 = vshrl.u32 %v91, 7
    %v93 = vsub.s32 0, %v92
    %v94 = vrot.slane %v89, %v93
    %vm96 = vcmask 261120
    %v98 = vsel %vm96, %v83, 0
    %v101 = vsel %vm96, %v84, 0
    %103 = vmatprep.subr.mxu0 0.0
    %104 = vmatpush1.msra.mxu0 %v85
    %105 = vmatprep.subr.mxu0 0.0
    %106 = vmatpush1.msra.mxu0 %v86
    %107 = vmatprep.subr.mxu0 0.0
    %108 = vmatpush1.msra.mxu0 %v87
    %109 = vmatprep.subr.mxu0 0.0
    %110 = vmatpush1.msra.mxu0 %v88
    %111 = vmatprep.subr.mxu0 0.0
    %112 = vmatpush1.msra.mxu0 0.0
    %113 = vmatprep.subr.mxu0 0.0
    %114 = vmatpush1.msra.mxu0 0.0
    %115 = vmatprep.subr.mxu0 0.0
    %116 = vmatpush1.msra.mxu0 0.0
    %117 = vmatprep.subr.mxu0 0.0
    %118 = vmatpush1.msra.mxu0 0.0
    %119 = vmatprep.subr.mxu0 0.0
    %120 = vmatpush1.msra.mxu0 0.0
    %121 = vmatprep.subr.mxu0 0.0
    %122 = vmatpush1.msra.mxu0 0.0
    %123 = vmatprep.subr.mxu0 0.0
    %124 = vmatpush1.msra.mxu0 0.0
    %125 = vmatprep.subr.mxu0 0.0
    %126 = vmatpush1.msra.mxu0 0.0
    %127 = vmatprep.subr.mxu0 0.0
    %128 = vmatpush1.msra.mxu0 0.0
    %129 = vmatprep.subr.mxu0 0.0
    %130 = vmatpush1.msra.mxu0 0.0
    %131 = vmatprep.subr.mxu0 0.0
    %132 = vmatpush1.msra.mxu0 0.0
    %133 = vmatprep.subr.mxu0 0.0
    %134 = vmatpush1.msra.mxu0 0.0
    %135 = vmatprep.subr.mxu0 0.0
    %136 = vmatpush1.msra.mxu0 0.0
    %137 = vmatprep.subr.mxu0 0.0
    %138 = vmatpush1.msra.mxu0 0.0
    %139 = vmatprep.subr.mxu0 0.0
    %140 = vmatpush1.msra.mxu0 0.0
    %141 = vmatprep.subr.mxu0 0.0
    %142 = vmatpush1.msra.mxu0 0.0
    %143 = vmatprep.subr.mxu0 0.0
    %144 = vmatpush1.msra.mxu0 0.0
    %145 = vmatprep.subr.mxu0 0.0
    %146 = vmatpush1.msra.mxu0 0.0
    %147 = vmatprep.subr.mxu0 0.0
    %148 = vmatpush1.msra.mxu0 0.0
    %149 = vmatprep.subr.mxu0 0.0
    %150 = vmatpush1.msra.mxu0 0.0
    %151 = vmatprep.subr.mxu0 0.0
    %152 = vmatpush1.msra.mxu0 0.0
    %153 = vmatprep.subr.mxu0 0.0
    %154 = vmatpush1.msra.mxu0 0.0
    %155 = vmatprep.subr.mxu0 0.0
    %156 = vmatpush1.msra.mxu0 0.0
    %157 = vmatprep.subr.mxu0 0.0
    %158 = vmatpush1.msra.mxu0 0.0
    %159 = vmatprep.subr.mxu0 0.0
    %160 = vmatpush1.msra.mxu0 0.0
    %161 = vmatprep.subr.mxu0 0.0
    %162 = vmatpush1.msra.mxu0 0.0
    %163 = vmatprep.subr.mxu0 0.0
    %164 = vmatpush1.msra.mxu0 0.0
    %165 = vmatprep.subr.mxu0 0.0
    %166 = vmatpush1.msra.mxu0 0.0
    %167 = vmatprep.mubr.f32.mxu0 0.0
    %168 = vmatmul.mubr.f32.gmra.mrb[0].mxu0 %v98
    %v169 = vpop.f32.mrb[0].mxu0
    %v170 = vadd.f32 %v94, %v169
    %v171 = vpop.f32.mrb[0].mxu0
    %172 = vmatprep.mubr.f32.mxu0 0.0
    %173 = vmatmul.mubr.f32.gmra.mrb[0].mxu0 %v101
    %v174 = vpop.f32.mrb[0].mxu0
    %v175 = vadd.f32 %v94, %v174
    %v176 = vpop.f32.mrb[0].mxu0
    %177 = vdwg.mxu0
    %v178 = vmul.f32 %v170, 0.5
    %v179 = vmul.f32 %v175, 0.5
    %v180 = vmul.f32 %v170, 0.044715
    %v181 = vmul.f32 %v175, 0.044715
    %v182 = vmul.f32 %v180, %v170
    %v183 = vmul.f32 %v181, %v175
    %v184 = vmul.f32 %v182, %v170
    %v185 = vmul.f32 %v183, %v175
    %v186 = vadd.f32 %v170, %v184
    %v187 = vadd.f32 %v175, %v185
    %v188 = vmul.f32 %v186, 0.7978846
    %v189 = vmul.f32 %v187, 0.7978846
    %v190 = vtanh.pop %v188
    %v191 = vtanh.pop %v189
    %v192 = vadd.f32 %v190, 1.0
    %v193 = vadd.f32 %v191, 1.0
    %v194 = vmul.f32 %v178, %v192
    %v195 = vmul.f32 %v179, %v193
    %v196 = vld [vmem:[#allocation3] sm:$0xff]
    %v197 = vld [vmem:[#allocation3 + $0x8] sm:$0xff]
    %v198 = vld [vmem:[%s5] sm:$0xff]
    %v199 = vld [vmem:[%s5 + $0x8] sm:$0xff]
    %v200 = vld [vmem:[%s5 + $0x10] sm:$0xff]
    %v201 = vld [vmem:[%s5 + $0x18] sm:$0xff]
    %v202 = vld [vmem:[%s5 + $0x20] sm:$0xff]
    %v203 = vld [vmem:[%s5 + $0x28] sm:$0xff]
    %v204 = vld [vmem:[%s5 + $0x30] sm:$0xff]
    %v205 = vld [vmem:[%s5 + $0x38] sm:$0xff]
    %vm206 = vcmask 523264
    %v208 = vsel %vm206, %v194, 0
    %v211 = vsel %vm206, %v195, 0
    %213 = vmatprep.subr.mxu0 0.0
    %214 = vmatpush1.msra.mxu0 %v198
    %215 = vmatprep.subr.mxu0 0.0
    %216 = vmatpush1.msra.mxu0 %v199
    %217 = vmatprep.subr.mxu0 0.0
    %218 = vmatpush1.msra.mxu0 %v200
    %219 = vmatprep.subr.mxu0 0.0
    %220 = vmatpush1.msra.mxu0 %v201
    %221 = vmatprep.subr.mxu0 0.0
    %222 = vmatpush1.msra.mxu0 %v202
    %223 = vmatprep.subr.mxu0 0.0
    %224 = vmatpush1.msra.mxu0 %v203
    %225 = vmatprep.subr.mxu0 0.0
    %226 = vmatpush1.msra.mxu0 %v204
    %227 = vmatprep.subr.mxu0 0.0
    %228 = vmatpush1.msra.mxu0 %v205
    %229 = vmatprep.subr.mxu0 0.0
    %230 = vmatpush1.msra.mxu0 0.0
    %231 = vmatprep.subr.mxu0 0.0
    %232 = vmatpush1.msra.mxu0 0.0
    %233 = vmatprep.subr.mxu0 0.0
    %234 = vmatpush1.msra.mxu0 0.0
    %235 = vmatprep.subr.mxu0 0.0
    %236 = vmatpush1.msra.mxu0 0.0
    %237 = vmatprep.subr.mxu0 0.0
    %238 = vmatpush1.msra.mxu0 0.0
    %239 = vmatprep.subr.mxu0 0.0
    %240 = vmatpush1.msra.mxu0 0.0
    %241 = vmatprep.subr.mxu0 0.0
    %242 = vmatpush1.msra.mxu0 0.0
    %243 = vmatprep.subr.mxu0 0.0
    %244 = vmatpush1.msra.mxu0 0.0
    %245 = vmatprep.subr.mxu0 0.0
    %246 = vmatpush1.msra.mxu0 0.0
    %247 = vmatprep.subr.mxu0 0.0
    %248 = vmatpush1.msra.mxu0 0.0
    %249 = vmatprep.subr.mxu0 0.0
    %250 = vmatpush1.msra.mxu0 0.0
    %251 = vmatprep.subr.mxu0 0.0
    %252 = vmatpush1.msra.mxu0 0.0
    %253 = vmatprep.subr.mxu0 0.0
    %254 = vmatpush1.msra.mxu0 0.0
    %255 = vmatprep.subr.mxu0 0.0
    %256 = vmatpush1.msra.mxu0 0.0
    %257 = vmatprep.subr.mxu0 0.0
    %258 = vmatpush1.msra.mxu0 0.0
    %259 = vmatprep.subr.mxu0 0.0
    %260 = vmatpush1.msra.mxu0 0.0
    %261 = vmatprep.subr.mxu0 0.0
    %262 = vmatpush1.msra.mxu0 0.0
    %263 = vmatprep.subr.mxu0 0.0
    %264 = vmatpush1.msra.mxu0 0.0
    %265 = vmatprep.subr.mxu0 0.0
    %266 = vmatpush1.msra.mxu0 0.0
    %267 = vmatprep.subr.mxu0 0.0
    %268 = vmatpush1.msra.mxu0 0.0
    %269 = vmatprep.subr.mxu0 0.0
    %270 = vmatpush1.msra.mxu0 0.0
    %271 = vmatprep.subr.mxu0 0.0
    %272 = vmatpush1.msra.mxu0 0.0
    %273 = vmatprep.subr.mxu0 0.0
    %274 = vmatpush1.msra.mxu0 0.0
    %275 = vmatprep.subr.mxu0 0.0
    %276 = vmatpush1.msra.mxu0 0.0
    %277 = vmatprep.mubr.f32.mxu0 0.0
    %278 = vmatmul.mubr.f32.gmra.mrb[0].mxu0 %v208
    %v279 = vpop.f32.mrb[0].mxu0
    %v280 = vadd.f32 0.0, %v279
    %v281 = vpop.f32.mrb[0].mxu0
    %282 = vmatprep.mubr.f32.mxu0 0.0
    %283 = vmatmul.mubr.f32.gmra.mrb[0].mxu0 %v211
    %v284 = vpop.f32.mrb[0].mxu0
    %v285 = vadd.f32 0.0, %v284
    %v286 = vpop.f32.mrb[0].mxu0
    %287 = vdwg.mxu0
    %v288 = vadd.f32 %v196, %v280
    %v289 = vadd.f32 %v197, %v285
    %290 = vst.msk [vmem:[#allocation3] sm:$0xff] %vm96, %v288
    %291 = vst.msk [vmem:[#allocation3 + $0x8] sm:$0xff] %vm96, %v289
    // Predicated region
    $region34: #{tpu_custom_call.1} parent=1 // pred_check
      %p292 = pneg %p27
    $region35: #{tpu_custom_call.1} parent=1 // pred_check_branch
      %294 = sbr.rel (%p292) target = $region37
    $region36: #{tpu_custom_call.1} parent=1 // pred_region
      %v295 = vld [vmem:[#allocation3] sm:$0xff]
      %v296 = vld [vmem:[#allocation3 + $0x8] sm:$0xff]
      %v297 = vld [vmem:[%s6] sm:$0x1]
      %v299 = vlaneseq
      %v300 = vshrl.u32 %v299, 7
      %v301 = vsub.s32 0, %v300
      %v302 = vrot.slane %v297, %v301
      %v304 = vadd.f32 %v295, %v302
      %v305 = vadd.f32 %v296, %v302
      %v306 = vld [vmem:[%s0] sm:$0xff]
      %v307 = vld [vmem:[%s0 + $0x8] sm:$0xff]
      %v308 = vadd.f32 %v304, %v306
      %v309 = vadd.f32 %v305, %v307
      %310 = vst.msk [vmem:[#allocation4] sm:$0xff] %vm96, %v308
      %311 = vst.msk [vmem:[#allocation4 + $0x8] sm:$0xff] %vm96, %v309
    $region37: #{tpu_custom_call.1} parent=1 // pred_fallthru
      _
    // Predicated region
    $region38: #{tpu_custom_call.1} parent=1 // pred_check
      _
    $region39: #{tpu_custom_call.1} parent=1 // pred_check_branch
      %313 = sbr.rel (0) target = $region41
    $region40: #{tpu_custom_call.1} parent=1 // pred_region
      %s315 = ssub.s32 256, 256
      %316 = vsyncadd [#allocation5], %s315
      %s317 = sshll.u32 [#allocation4], 4
      %s318 = int_to_ptr.vmem [resolvable:$true] %s317
      %323 = dma.vmem_to_hbm [thread:$0]  %s318, 256, %s7, [#allocation5], 128, 128, 8
    $region41: #{tpu_custom_call.1} parent=1 // pred_fallthru
      _
    // Predicated region
    $region42: #{tpu_custom_call.1} parent=1 // pred_check
      _
    $region43: #{tpu_custom_call.1} parent=1 // pred_check_branch
      %325 = sbr.rel (0) target = $region45
    $region44: #{tpu_custom_call.1} parent=1 // pred_region
      %326 = dma.done [#allocation5], 256
    $region45: #{tpu_custom_call.1} parent=1 // pred_fallthru
      _
    %327 = vsyncpa [#allocation5], 1

</llo_original>
